<compile_context>
chip_gen: v7x
topology: tpu7x:2x2x1
jax: 0.10.0
libtpu: 0.0.40
codegen_flags: <defaults>
</compile_context>

<pallas_src>
import math

import jax
import jax.numpy as jnp
from jax.experimental import pallas as pl
from jax.experimental.pallas import tpu as pltpu


def _device_kind():
    try:
        return jax.devices()[0].device_kind.lower()
    except Exception:
        return ""


_KIND = _device_kind()
_IS_V7X = ("v7" in _KIND) or ("7x" in _KIND)

# Per-generation block-size target (see header comment).
_TARGET_BLOCK_BYTES = (4 << 20) if _IS_V7X else (1 << 20)
_MAX_LANE_TILE = 2048            # max lanes per block (multiple of 128)


def _round_down(x, m):
    return (x // m) * m


def _round_up(x, m):
    return -(-x // m) * m


def _row_granule(itemsize):
    # Sublane packing granule: f32 -> 8 rows, bf16 -> 16, int8/fp8 -> 32.
    return {4: 8, 2: 16, 1: 32}.get(itemsize, 8)


def _pick_lane_tile(n_lanes):
    """Lane (last-dim) tile: full dim if modest, else a 128-multiple slab.

    Note: no escape for unaligned huge dims -- Pallas masks the partial final
    lane block, and capping keeps blocks ~1-4 MiB so double-buffering fits VMEM.
    """
    if n_lanes <= _MAX_LANE_TILE:
        return n_lanes
    return _MAX_LANE_TILE


def _pick_row_tile(n_rows, lane_tile, itemsize, granule):
    """Row (sublane) tile: ~_TARGET_BLOCK_BYTES, multiple of the dtype granule."""
    if n_rows <= granule:
        return n_rows                       # full dim is always legal
    by_bytes = max(granule,
                   _round_down(_TARGET_BLOCK_BYTES // (lane_tile * itemsize), granule))
    full = n_rows if n_rows % granule == 0 else _round_down(n_rows, granule)
    return max(granule, min(full, by_bytes))


# ------------------- kernel: pure VPU broadcast add -------------------
def _row_bias_kernel(x_ref, b_ref, o_ref):
    # x: (TR, TL), b: (1, TL)  -> bias broadcast across rows (sublanes)
    o_ref[...] = x_ref[...] + b_ref[...]


# ------------------- tiled, pipelined wrapper -------------------
def _broadcast_add_rows(x2d, bias_row):
    """x2d (R, L) + bias_row (1, L), tiled over rows and (if large) lanes."""
    r, l = x2d.shape
    itemsize = x2d.dtype.itemsize
    granule = _row_granule(itemsize)
    tl = _pick_lane_tile(l)
    tr = _pick_row_tile(r, tl, itemsize, granule)

    # v7x has 2 TensorCores: make sure there are >= 2 blocks along a
    # "parallel" grid axis so the work can be sharded across both.
    if _IS_V7X and pl.cdiv(r, tr) == 1 and pl.cdiv(l, tl) == 1 and r >= 2 * granule:
        tr = min(tr, max(granule, _round_up((r + 1) // 2, granule)))

    grid = (pl.cdiv(r, tr), pl.cdiv(l, tl))
    cost = pl.CostEstimate(
        flops=r * l,
        transcendentals=0,
        bytes_accessed=2 * r * l * itemsize + l * itemsize,
    )
    return pl.pallas_call(
        _row_bias_kernel,
        out_shape=jax.ShapeDtypeStruct((r, l), x2d.dtype),
        grid_spec=pltpu.PrefetchScalarGridSpec(
            num_scalar_prefetch=0,
            grid=grid,
            in_specs=[
                pl.BlockSpec((tr, tl), lambda i, j: (i, j)),
                pl.BlockSpec((1, tl), lambda i, j: (0, j)),
            ],
            out_specs=pl.BlockSpec((tr, tl), lambda i, j: (i, j)),
        ),
        compiler_params=pltpu.CompilerParams(
            dimension_semantics=("parallel", "parallel"),
        ),
        cost_estimate=cost,
    )(x2d, bias_row)


# ------------------- row-wise dispatcher (handles narrow last dims) -------------------
def _add_bias_rowwise(x2d, bias_1d):
    """x2d (N, L) + bias_1d (L,), choosing a lane-dense layout."""
    n, l = x2d.shape
    if l >= 128:
        return _broadcast_add_rows(x2d, bias_1d.reshape(1, l))

    # Narrow rows (e.g. PPO action dims ~4-64): fold several rows into one
    # lane-axis slab so stores are unmasked, 128-multiple-width vst.
    base = (l * 128) // math.gcd(l, 128)            # lcm(l, 128)
    total = n * l
    if total < base:
        return x2d + bias_1d.reshape(1, l)          # tiny: launch overhead dominates

    max_mult = max(1, _MAX_LANE_TILE // base)
    lane_w = base * min(max_mult, total // base)    # wide, lane-dense fold width
    rows_per_fold = lane_w // l
    n_main = (n // rows_per_fold) * rows_per_fold

    bias_row = jnp.tile(bias_1d, lane_w // l).reshape(1, lane_w)
    main = _broadcast_add_rows(
        x2d[:n_main].reshape((n_main * l) // lane_w, lane_w), bias_row
    ).reshape(n_main, l)
    if n_main == n:
        return main
    # Few leftover rows: plain jnp beats a masked-store, low-lane-utilization kernel.
    tail = x2d[n_main:] + bias_1d.reshape(1, l)
    return jnp.concatenate([main, tail], axis=0)


# ------------------- dispatch: 2D / 4D -------------------
def _add_bias_2d(x, bias_1d):
    return _add_bias_rowwise(x, bias_1d)


def _add_bias_4d(x, bias_1d):
    n, c, h, w = x.shape
    # Lane-dense Option A: (N, C*H*W) with a precomputed bias row (each bias
    # value repeated H*W times).  No N-sized bias array, no per-step narrow DMA.
    x2 = x.reshape(n, c * h * w)
    bias_row = jnp.repeat(bias_1d, h * w)
    out = _add_bias_rowwise(x2, bias_row)
    return out.reshape(n, c, h, w)


class AddBias:
    """JAX/Pallas port of the PyTorch AddBias module."""

    def __init__(self, bias, min_pallas_bytes=64 * 1024):
        # bias: 1-D array of shape (C,); stored as (C, 1) like bias.unsqueeze(1)
        self._bias = jnp.asarray(bias).reshape(-1, 1)
        self._min_pallas_bytes = min_pallas_bytes

    def __call__(self, x):
        c = self._bias.shape[0]
        bias = self._bias.reshape(c).astype(x.dtype)     # match x dtype exactly
        nbytes = x.size * x.dtype.itemsize
        if x.ndim == 2:
            if nbytes < self._min_pallas_bytes:
                return x + bias.reshape(1, c)
            return _add_bias_2d(x, bias)
        assert x.ndim == 4, "AddBias expects 2D or 4D input"
        if nbytes < self._min_pallas_bytes:
            return x + bias.reshape(1, c, 1, 1)
        return _add_bias_4d(x, bias)


if __name__ == "__main__":
    key = jax.random.PRNGKey(0)
    k_bias, k_x2, k_x2b, k_x2c, k_x2w, k_x4 = jax.random.split(key, 6)

    C = 4
    bias = jax.random.normal(k_bias, (C,), dtype=jnp.float32)

    module = AddBias(bias)                       # tiny inputs take the jnp fast path
    module_pallas = AddBias(bias, min_pallas_bytes=0)   # force the Pallas kernels

    # --- 2D tiny: (N, C) ---
    x2 = jax.random.normal(k_x2, (2, C), dtype=jnp.float32)
    ref2 = x2 + bias.reshape(1, C)
    for m in (module, module_pallas):
        y2 = jax.block_until_ready(m(x2))
        assert y2.shape == x2.shape and y2.dtype == x2.dtype
        assert jnp.allclose(y2, ref2, atol=1e-6), "2D mismatch"

    # --- 2D lane-dense fold, fold width divides N*C ---
    x2b = jax.random.normal(k_x2b, (256, C), dtype=jnp.float32)
    y2b = jax.block_until_ready(module_pallas(x2b))
    assert y2b.shape == x2b.shape and y2b.dtype == x2b.dtype
    assert jnp.allclose(y2b, x2b + bias.reshape(1, C), atol=1e-6), "2D fold mismatch"

    # --- 2D lane-dense fold with aligned prefix + jnp tail ---
    x2c = jax.random.normal(k_x2c, (300, C), dtype=jnp.float32)
    y2c = jax.block_until_ready(module_pallas(x2c))
    assert y2c.shape == x2c.shape and y2c.dtype == x2c.dtype
    assert jnp.allclose(y2c, x2c + bias.reshape(1, C), atol=1e-6), "2D prefix/tail mismatch"

    # --- 2D wide hidden dim, tiled over rows ---
    CW = 384
    bias_w = jax.random.normal(k_bias, (CW,), dtype=jnp.float32)
    mod_w = AddBias(bias_w, min_pallas_bytes=0)
    x2w = jax.random.normal(k_x2w, (1024, CW), dtype=jnp.float32)
    y2w = jax.block_until_ready(mod_w(x2w))
    assert jnp.allclose(y2w, x2w + bias_w.reshape(1, CW), atol=1e-6), "2D wide mismatch"

    # --- 4D case: (N, C, H, W) ---
    x4 = jax.random.normal(k_x4, (2, C, 16, 16), dtype=jnp.float32)
    ref4 = x4 + bias.reshape(1, C, 1, 1)
    for m in (module, module_pallas):
        y4 = jax.block_until_ready(m(x4))
        assert y4.shape == x4.shape and y4.dtype == x4.dtype
        assert jnp.allclose(y4, ref4, atol=1e-6), "4D mismatch"

    # --- 4D bf16 (exercises the 16-row sublane granule) ---
    x4b = jax.random.normal(k_x4, (32, C, 16, 16), dtype=jnp.float32).astype(jnp.bfloat16)
    y4b = jax.block_until_ready(module_pallas(x4b))
    ref4b = x4b + bias.astype(jnp.bfloat16).reshape(1, C, 1, 1)
    assert y4b.shape == x4b.shape and y4b.dtype == x4b.dtype
    assert jnp.allclose(y4b.astype(jnp.float32), ref4b.astype(jnp.float32),
                        atol=1e-2), "4D bf16 mismatch"

    print("KERNEL_OK")
</pallas_src>

<mosaic_0001>
module attributes {stable_mosaic.version = 11 : i64} {
  func.func @_row_bias_kernel(%arg0: i32, %arg1: i32, %arg2: memref<1x1024xf32, #tpu.memory_space<vmem>>, %arg3: memref<1x1024xf32, #tpu.memory_space<vmem>>, %arg4: memref<1x1024xf32, #tpu.memory_space<vmem>>) attributes {dimension_semantics = [#tpu.dimension_semantics<parallel>, #tpu.dimension_semantics<parallel>], iteration_bounds = array<i64: 1, 1>, scalar_prefetch = 0 : i64, scratch_operands = 0 : i64, tpu.core_type = #tpu.core_type<tc>, window_params = [{transform_indices = @transform_0, window_bounds = array<i64: 1, 1024>}, {transform_indices = @transform_1, window_bounds = array<i64: 1, 1024>}, {transform_indices = @transform_2, window_bounds = array<i64: 1, 1024>}]} {
    %c0 = arith.constant 0 : index
    %c0_0 = arith.constant 0 : index
    %0 = vector.load %arg2[%c0, %c0_0] : memref<1x1024xf32, #tpu.memory_space<vmem>>, vector<1x1024xf32>
    %c0_1 = arith.constant 0 : index
    %c0_2 = arith.constant 0 : index
    %1 = vector.load %arg3[%c0_1, %c0_2] : memref<1x1024xf32, #tpu.memory_space<vmem>>, vector<1x1024xf32>
    %2 = arith.addf %0, %1 : vector<1x1024xf32>
    %c0_3 = arith.constant 0 : index
    %c0_4 = arith.constant 0 : index
    %3 = vector.load %arg4[%c0_3, %c0_4] : memref<1x1024xf32, #tpu.memory_space<vmem>>, vector<1x1024xf32>
    tpu.vector_store %arg4[%c0_3, %c0_4], %2 {strides = array<i32>} : memref<1x1024xf32, #tpu.memory_space<vmem>>, vector<1x1024xf32>,
    return
  }
  func.func @transform_0(%arg0: i32, %arg1: i32) -> (i32, i32) {
    %c0_i32 = arith.constant 0 : i32
    return %arg0, %arg1 : i32, i32
  }
  func.func @transform_1(%arg0: i32, %arg1: i32) -> (i32, i32) {
    %c0_i32 = arith.constant 0 : i32
    %c0_i32_0 = arith.constant 0 : i32
    return %c0_i32, %arg1 : i32, i32
  }
  func.func @transform_2(%arg0: i32, %arg1: i32) -> (i32, i32) {
    %c0_i32 = arith.constant 0 : i32
    return %arg0, %arg1 : i32, i32
  }
}

</mosaic_0001>

<llo_original>
// kernel: tpu_custom_call.1
$region0: #{tpu_custom_call.1}
  #allocation0 [shape = 'u32[]', space=smem, size = 0x4, offset = 0x4, fixed_abs, tag = 'smem constant byte address 0x4 - core index']
  #allocation1 [shape = 'u32[144,128]{1,0:T(1,128)}', space=vmem, size = 0x12000, scoped, tag = 'internal scratch']
  %s0 = inlined_call_operand.hbm [shape: f32[1,1024], index: 0, kind: input, shape index: {}]
  %s1 = inlined_call_operand.hbm [shape: f32[1,1024], index: 1, kind: input, shape index: {}]
  %s2 = inlined_call_operand.hbm [shape: f32[1,1024], index: 2, kind: output, shape index: {}]
  %s3 = sld [smem:[#allocation0]]
  $region26: #{tpu_custom_call.1} parent=0
    _
  %s5 = ssub.s32 1, %s3
  %s6 = scalar_select 0, %s5, %s3
  $region1: #{tpu_custom_call.1} parent=0
    #allocation2 [shape = 'u8[4096]{0}', space=vmem, size = 0x1000, scoped, tag = 'input window, operand 0, single buffered']
    #allocation3 [shape = 's32[1]{0}', space=sflag, size = 0x4, scoped, tag = 'scoped memory for tpu_custom_call.1']
    #allocation4 [shape = 's32[1]{0}', space=sflag, size = 0x4, scoped, tag = 'scoped memory for tpu_custom_call.1']
    #allocation5 [shape = 'u8[4096]{0}', space=vmem, size = 0x1000, scoped, tag = 'input window, operand 1, single buffered']
    #allocation6 [shape = 's32[1]{0}', space=sflag, size = 0x4, scoped, tag = 'scoped memory for tpu_custom_call.1']
    #allocation7 [shape = 'u8[4096]{0}', space=vmem, size = 0x1000, scoped, tag = 'output window, operand 0, single buffered']
    %7 = vsyncpa [#allocation3], 0
    %8 = vsyncpa [#allocation6], 0
    %9 = vsyncpa [#allocation4], 0
    // Predicated region
    $region2: #{tpu_custom_call.1} parent=1 // pred_check
      _
    $region3: #{tpu_custom_call.1} parent=1 // pred_check_branch
      %11 = sbr.rel (0) target = $region5
    $region4: #{tpu_custom_call.1} parent=1 // pred_region
      %s13 = ssub.s32 128, 128
      %14 = vsyncadd [#allocation3], %s13
      %s16 = sshll.u32 [#allocation2], 4
      %s17 = int_to_ptr.vmem [resolvable:$true] %s16
      %19 = dma.hbm_to_vmem [thread:$0]  %s0, 128, %s17, [#allocation3]
    $region5: #{tpu_custom_call.1} parent=1 // pred_fallthru
      _
    // Predicated region
    $region6: #{tpu_custom_call.1} parent=1 // pred_check
      _
    $region7: #{tpu_custom_call.1} parent=1 // pred_check_branch
      %21 = sbr.rel (0) target = $region9
    $region8: #{tpu_custom_call.1} parent=1 // pred_region
      %s23 = ssub.s32 128, 128
      %24 = vsyncadd [#allocation6], %s23
      %s26 = sshll.u32 [#allocation5], 4
      %s27 = int_to_ptr.vmem [resolvable:$true] %s26
      %29 = dma.hbm_to_vmem [thread:$0]  %s1, 128, %s27, [#allocation6]
    $region9: #{tpu_custom_call.1} parent=1 // pred_fallthru
      _
    // Predicated region
    $region10: #{tpu_custom_call.1} parent=1 // pred_check
      _
    $region11: #{tpu_custom_call.1} parent=1 // pred_check_branch
      %31 = sbr.rel (0) target = $region13
    $region12: #{tpu_custom_call.1} parent=1 // pred_region
      %32 = dma.done [#allocation3], 128
    $region13: #{tpu_custom_call.1} parent=1 // pred_fallthru
      _
    // Predicated region
    $region14: #{tpu_custom_call.1} parent=1 // pred_check
      _
    $region15: #{tpu_custom_call.1} parent=1 // pred_check_branch
      %34 = sbr.rel (0) target = $region17
    $region16: #{tpu_custom_call.1} parent=1 // pred_region
      %35 = dma.done [#allocation6], 128
    $region17: #{tpu_custom_call.1} parent=1 // pred_fallthru
      _
    %v36 = vld [vmem:[#allocation2] sm:$0xff]
    %v37 = vld [vmem:[#allocation5] sm:$0xff]
    %v38 = vadd.f32 %v36, %v37
    %39 = vst [vmem:[#allocation7] sm:$0xff] %v38
    // Predicated region
    $region18: #{tpu_custom_call.1} parent=1 // pred_check
      _
    $region19: #{tpu_custom_call.1} parent=1 // pred_check_branch
      %41 = sbr.rel (0) target = $region21
    $region20: #{tpu_custom_call.1} parent=1 // pred_region
      %s43 = ssub.s32 128, 128
      %44 = vsyncadd [#allocation4], %s43
      %s46 = sshll.u32 [#allocation7], 4
      %s47 = int_to_ptr.vmem [resolvable:$true] %s46
      %49 = dma.vmem_to_hbm [thread:$0]  %s47, 128, %s2, [#allocation4]
    $region21: #{tpu_custom_call.1} parent=1 // pred_fallthru
      _
    // Predicated region
    $region22: #{tpu_custom_call.1} parent=1 // pred_check
      _
    $region23: #{tpu_custom_call.1} parent=1 // pred_check_branch
      %51 = sbr.rel (0) target = $region25
    $region24: #{tpu_custom_call.1} parent=1 // pred_region
      %52 = dma.done [#allocation4], 128
    $region25: #{tpu_custom_call.1} parent=1 // pred_fallthru
      _
    %53 = vsyncpa [#allocation3], 1
    %54 = vsyncpa [#allocation6], 1
    %55 = vsyncpa [#allocation4], 1

</llo_original>
